<compile_context>
chip_gen: v7x
topology: tpu7x:2x2x1
jax: 0.10.0
libtpu: 0.0.40
codegen_flags: <defaults>
</compile_context>

<pallas_src>
import functools

import jax
import jax.numpy as jnp
from jax.experimental import pallas as pl
from jax.experimental.pallas import tpu as pltpu

_MIB = 1024 * 1024
_IMPL_CACHE = {}


def _vmem_capacity_bytes():
    """Per-TensorCore VMEM capacity; conservative 64 MiB (v7x) if query fails."""
    try:
        info = pltpu.get_tpu_info()
        cap = int(getattr(info, "vmem_capacity_bytes", 0) or 0)
        if cap > 0:
            return cap
    except Exception:
        pass
    return 64 * _MIB


def _choose_td(D, HW, N, inner_steps, per_lane_bytes, fixed_bytes, budget_bytes,
               min_steps=8):
    """Pick how many d-planes (td) each grid step processes (ts = td*H*W lanes).

    ts must be a multiple of 128 (lane alignment of the flattened spatial axis)
    or td == D (full-extent block).  Prefers the largest tile that fits the VMEM
    budget while keeping >= min_steps total grid steps so the DMA pipeline has
    work to overlap and both v7x TensorCores get steps.
    """
    cands = []
    for td in range(1, D + 1):
        if D % td:
            continue
        ts = td * HW
        if ts % 128 != 0 and td != D:
            continue
        vmem = fixed_bytes + per_lane_bytes * ts
        steps = N * (D // td) * inner_steps
        cands.append((td, ts, vmem, steps))
    fits = [c for c in cands if c[2] <= budget_bytes]
    if not fits:
        fits = [min(cands, key=lambda c: c[2])]
    good = [c for c in fits if c[3] >= min_steps]
    if good:
        return max(good, key=lambda c: c[1])[0]        # largest tile, still pipelined
    big = [c for c in fits if c[1] >= 512] or fits
    return max(big, key=lambda c: c[3])[0]             # small problem: most steps


# ----------------------------------------------------------------------------
# Fused path: GEMM + in-kernel (kh, kw) pixel shuffle; kd handled by BlockSpec.
# ----------------------------------------------------------------------------
def _fused_kernel(w_ref, b_ref, x_ref, o_ref, *, Co, k, td, H, W, compute_dtype):
    # w_ref: (Co*k*k, Ci)   rows = (co, kh, kw)         [for the grid's kd]
    # x_ref: (Ci, ts)       lanes = (d_local, h, w), ts = td*H*W
    # o_ref: (Co, td, H, k*W*k)   last dim = (kh, w, kw) interleaved
    xv = x_ref[...]
    if compute_dtype is not None and xv.dtype != compute_dtype:
        xv = xv.astype(compute_dtype)                  # in-kernel cast: no HBM pass
    acc = jnp.dot(w_ref[...], xv, preferred_element_type=jnp.float32)
    acc = acc + b_ref[...]                             # (Co*k*k, 1) f32 bias
    y = acc.reshape(Co, k, k, td, H, W)                # (co, kh, kw, d, h, w)
    y = jnp.transpose(y, (0, 3, 4, 1, 5, 2))           # (co, d, h, kh, w, kw)
    o_ref[...] = y.reshape(Co, td, H, k * W * k).astype(o_ref.dtype)


def _build_fused(N, Ci, Co, D, H, W, k, x_dtype, compute_dtype, out_dtype):
    HW = H * W
    S = D * HW
    Cokk = Co * k * k
    kWk = k * W * k
    x_b = jnp.dtype(x_dtype).itemsize
    o_b = jnp.dtype(out_dtype).itemsize
    c_dt = jnp.dtype(compute_dtype) if compute_dtype is not None else jnp.dtype(x_dtype)
    c_b = c_dt.itemsize

    cap = _vmem_capacity_bytes()
    budget = int(min(max(cap * 0.15, 4 * _MIB), 24 * _MIB))
    # per lane of ts: 2x double-buffered x, 2x double-buffered out, f32 accumulator
    # plus ~2x its size for relayout temporaries of the in-kernel shuffle.
    per_lane = 2 * Ci * x_b + Co * k * k * (2 * o_b + 4 * 3)
    if c_b != x_b:
        per_lane += Ci * c_b
    fixed = 2 * (k * Cokk * Ci * c_b + Cokk * 4) + 1 * _MIB
    td = _choose_td(D, HW, N, k, per_lane, fixed, budget)
    ts = td * HW
    footprint = fixed + per_lane * ts
    vmem_limit = int(min(0.75 * cap, max(32 * _MIB, 2 * footprint + 8 * _MIB)))

    kern = functools.partial(
        _fused_kernel, Co=Co, k=k, td=td, H=H, W=W,
        compute_dtype=(None if compute_dtype is None else jnp.dtype(compute_dtype)))

    cost = pl.CostEstimate(
        flops=2 * N * S * Ci * Co * k ** 3 + N * S * Co * k ** 3,
        transcendentals=0,
        bytes_accessed=(N * Ci * S * x_b + k * Cokk * Ci * c_b + Cokk * 4
                        + N * Co * k ** 3 * S * o_b),
    )

    def fwd(x, weight, bias):
        xr = x.reshape(N, Ci, S)                                     # free view, no cast
        w2 = jnp.transpose(weight, (2, 1, 3, 4, 0)).reshape(k, Cokk, Ci).astype(c_dt)
        b2 = jnp.repeat(bias.astype(jnp.float32), k * k).reshape(Cokk, 1)
        out6 = pl.pallas_call(
            kern,
            out_shape=jax.ShapeDtypeStruct((N, Co, D, k, H, kWk), out_dtype),
            grid_spec=pltpu.PrefetchScalarGridSpec(
                num_scalar_prefetch=0,
                grid=(N, D // td, k),                                # kd innermost
                in_specs=[
                    pl.BlockSpec((None, Cokk, Ci), lambda n, d, kd: (kd, 0, 0)),
                    pl.BlockSpec((Cokk, 1), lambda n, d, kd: (0, 0)),
                    # x block index ignores kd -> reused (no re-DMA) across kd steps
                    pl.BlockSpec((None, Ci, ts), lambda n, d, kd: (n, 0, d)),
                ],
                out_specs=pl.BlockSpec((None, Co, td, None, H, kWk),
                                       lambda n, d, kd: (n, 0, d, kd, 0, 0)),
            ),
            compiler_params=pltpu.CompilerParams(
                dimension_semantics=("parallel", "parallel", "arbitrary"),
                vmem_limit_bytes=vmem_limit,
            ),
            cost_estimate=cost,
        )(w2, b2, xr)
        # (N, Co, D, k, H, k*W*k) -> (N, Co, D*k, H*k, W*k) is a FREE reshape.
        return out6.reshape(N, Co, D * k, H * k, W * k)

    return jax.jit(fwd)


# ----------------------------------------------------------------------------
# Fallback path: lane-dense GEMM kernel + XLA permutation (known-good design).
# ----------------------------------------------------------------------------
def _unfused_kernel(w_ref, b_ref, x_ref, o_ref, *, compute_dtype):
    xv = x_ref[...]
    if compute_dtype is not None and xv.dtype != compute_dtype:
        xv = xv.astype(compute_dtype)
    acc = jnp.dot(w_ref[...], xv, preferred_element_type=jnp.float32)
    o_ref[...] = (acc + b_ref[...]).astype(o_ref.dtype)


def _build_unfused(N, Ci, Co, D, H, W, k, x_dtype, compute_dtype, out_dtype):
    HW = H * W
    S = D * HW
    ncols = Co * k ** 3
    x_b = jnp.dtype(x_dtype).itemsize
    o_b = jnp.dtype(out_dtype).itemsize
    c_dt = jnp.dtype(compute_dtype) if compute_dtype is not None else jnp.dtype(x_dtype)
    c_b = c_dt.itemsize

    cap = _vmem_capacity_bytes()
    budget = int(min(max(cap * 0.15, 4 * _MIB), 24 * _MIB))
    per_lane = 2 * Ci * x_b + ncols * (2 * o_b + 4)     # f32 accumulator counted
    if c_b != x_b:
        per_lane += Ci * c_b
    fixed = 2 * (ncols * Ci * c_b + ncols * 4) + 1 * _MIB
    td = _choose_td(D, HW, N, 1, per_lane, fixed, budget)
    ts = td * HW
    footprint = fixed + per_lane * ts
    vmem_limit = int(min(0.75 * cap, max(32 * _MIB, 2 * footprint + 8 * _MIB)))

    kern = functools.partial(
        _unfused_kernel,
        compute_dtype=(None if compute_dtype is None else jnp.dtype(compute_dtype)))

    cost = pl.CostEstimate(
        flops=2 * N * S * Ci * ncols + N * S * ncols,
        transcendentals=0,
        bytes_accessed=(N * Ci * S * x_b + ncols * Ci * c_b + ncols * 4
                        + N * ncols * S * o_b),
    )

    def fwd(x, weight, bias):
        xr = x.reshape(N, Ci, S)                                     # free view, no cast
        wT = weight.reshape(Ci, ncols).T.astype(c_dt)                # cols = (co,kd,kh,kw)
        b2 = jnp.repeat(bias.astype(jnp.float32), k ** 3).reshape(ncols, 1)
        out3 = pl.pallas_call(
            kern,
            out_shape=jax.ShapeDtypeStruct((N, ncols, S), out_dtype),
            grid_spec=pltpu.PrefetchScalarGridSpec(
                num_scalar_prefetch=0,
                grid=(N, S // ts),
                in_specs=[
                    pl.BlockSpec((ncols, Ci), lambda n, j: (0, 0)),
                    pl.BlockSpec((ncols, 1), lambda n, j: (0, 0)),
                    pl.BlockSpec((None, Ci, ts), lambda n, j: (n, 0, j)),
                ],
                out_specs=pl.BlockSpec((None, ncols, ts), lambda n, j: (n, 0, j)),
            ),
            compiler_params=pltpu.CompilerParams(
                dimension_semantics=("parallel", "parallel"),
                vmem_limit_bytes=vmem_limit,
            ),
            cost_estimate=cost,
        )(wT, b2, xr)
        out = out3.reshape(N, Co, k, k, k, D, H, W)      # (n,co,kd,kh,kw,d,h,w)
        out = jnp.transpose(out, (0, 1, 5, 2, 6, 3, 7, 4))
        return out.reshape(N, Co, D * k, H * k, W * k)

    return jax.jit(fwd)


# ----------------------------------------------------------------------------
# Public entry point + reference.
# ----------------------------------------------------------------------------
def _reference(x, weight, bias, k):
    """Pure-JAX ConvTranspose3d(k == s, padding=0) reference."""
    N, Ci, D, H, W = x.shape
    Co = weight.shape[1]
    o = jnp.einsum("ncdhw,cokpq->nodkhpwq", x, weight)
    o = o.reshape(N, Co, D * k, H * k, W * k)
    return o + bias[None, :, None, None, None]


def basic_upsample_3d_block(x, weight, bias, *, kernel_size, stride,
                            compute_dtype=None, out_dtype=None):
    """Forward pass of BasicUpSample3DBlock.

    x:      (N, Ci, D, H, W)
    weight: (Ci, Co, k, k, k)   PyTorch ConvTranspose3d layout
    bias:   (Co,)
    compute_dtype: optional MXU operand dtype (e.g. jnp.bfloat16 on v6e/v7x).
                   The activation tile is cast IN-KERNEL (no extra HBM pass);
                   accumulation is always f32.  Note this quantizes the
                   activations, so accuracy depends on x's dynamic range.
    out_dtype:     optional output dtype (e.g. jnp.bfloat16) independent of x.
    returns (N, Co, D*k, H*k, W*k)  for kernel_size == stride, padding = 0.
    """
    assert kernel_size == stride, "BasicUpSample3DBlock uses kernel_size == stride"
    # TODO(synk): general overlapping ConvTranspose3d (kernel_size != stride or
    # padding != 0) would need an additive window scatter; unused by this module.
    k = int(kernel_size)
    N, Ci, D, H, W = x.shape
    assert weight.shape == (Ci, weight.shape[1], k, k, k), weight.shape
    Co = weight.shape[1]
    out_dt = jnp.dtype(out_dtype) if out_dtype is not None else jnp.dtype(x.dtype)

    key = (N, Ci, Co, D, H, W, k, str(x.dtype), str(weight.dtype), str(bias.dtype),
           None if compute_dtype is None else str(jnp.dtype(compute_dtype)), str(out_dt))
    impl = _IMPL_CACHE.get(key)
    if impl is None:
        args = dict(N=N, Ci=Ci, Co=Co, D=D, H=H, W=W, k=k, x_dtype=x.dtype,
                    compute_dtype=compute_dtype, out_dtype=out_dt)
        try:
            fused = _build_fused(**args)
            if N * Co * D * H * W * k ** 3 <= 8 * 1024 * 1024:
                # small problem: verify the fused shuffle numerically.
                got = jax.block_until_ready(fused(x, weight, bias))
                ref = _reference(x, weight, bias, k).astype(out_dt)
                low_prec = (jnp.dtype(out_dt).itemsize < 4 or x.dtype.itemsize < 4 or
                            (compute_dtype is not None
                             and jnp.dtype(compute_dtype).itemsize < 4))
                tol = 5e-2 if low_prec else 1e-4
                if not jnp.allclose(got.astype(jnp.float32), ref.astype(jnp.float32),
                                    atol=tol, rtol=tol):
                    raise ValueError("fused pixel-shuffle kernel failed self-check")
            else:
                fused.lower(x, weight, bias).compile()   # Mosaic lowering probe only
            impl = fused
        except Exception:
            impl = _build_unfused(**args)
        _IMPL_CACHE[key] = impl
    return impl(x, weight, bias)


if __name__ == "__main__":
    key = jax.random.PRNGKey(0)
    k_x, k_w, k_b = jax.random.split(key, 3)

    N, Ci, Co = 2, 4, 4
    D = H = W = 16
    kernel_size = stride = 2

    x = jax.random.normal(k_x, (N, Ci, D, H, W), dtype=jnp.float32)
    weight = 0.1 * jax.random.normal(
        k_w, (Ci, Co, kernel_size, kernel_size, kernel_size), dtype=jnp.float32)
    bias = 0.1 * jax.random.normal(k_b, (Co,), dtype=jnp.float32)

    ref = _reference(x, weight, bias, kernel_size)

    # f32 path
    out = basic_upsample_3d_block(x, weight, bias, kernel_size=kernel_size, stride=stride)
    out = jax.block_until_ready(out)
    assert out.shape == (N, Co, D * stride, H * stride, W * stride), out.shape
    assert jnp.allclose(out, ref, atol=1e-4, rtol=1e-4), float(jnp.abs(out - ref).max())

    # bf16-operand + bf16-output path (in-kernel cast; f32 accumulation)
    out_bf16 = basic_upsample_3d_block(
        x, weight, bias, kernel_size=kernel_size, stride=stride,
        compute_dtype=jnp.bfloat16, out_dtype=jnp.bfloat16)
    out_bf16 = jax.block_until_ready(out_bf16)
    assert out_bf16.dtype == jnp.dtype(jnp.bfloat16), out_bf16.dtype
    assert jnp.allclose(out_bf16.astype(jnp.float32), ref, atol=3e-2, rtol=3e-2), float(
        jnp.abs(out_bf16.astype(jnp.float32) - ref).max())

    print("KERNEL_OK")
</pallas_src>

<mosaic_0001>
module attributes {stable_mosaic.version = 11 : i64} {
  func.func @_fused_kernel(%arg0: i32, %arg1: i32, %arg2: i32, %arg3: memref<1x16x4xf32, #tpu.memory_space<vmem>>, %arg4: memref<16x1xf32, #tpu.memory_space<vmem>>, %arg5: memref<1x4x2048xf32, #tpu.memory_space<vmem>>, %arg6: memref<1x4x8x1x16x64xf32, #tpu.memory_space<vmem>>) attributes {dimension_semantics = [#tpu.dimension_semantics<parallel>, #tpu.dimension_semantics<parallel>, #tpu.dimension_semantics<arbitrary>], iteration_bounds = array<i64: 2, 2, 2>, scalar_prefetch = 0 : i64, scratch_operands = 0 : i64, tpu.core_type = #tpu.core_type<tc>, window_params = [{transform_indices = @transform_0, window_bounds = array<i64: 1, 16, 4>}, {pipeline_mode = #tpu.pipeline_mode<synchronous>, transform_indices = @transform_1, window_bounds = array<i64: 16, 1>}, {transform_indices = @transform_2, window_bounds = array<i64: 1, 4, 2048>}, {transform_indices = @transform_3, window_bounds = array<i64: 1, 4, 8, 1, 16, 64>}]} {
    %c0 = arith.constant 0 : index
    %c0_0 = arith.constant 0 : index
    %c0_1 = arith.constant 0 : index
    %0 = vector.load %arg5[%c0, %c0_0, %c0_1] : memref<1x4x2048xf32, #tpu.memory_space<vmem>>, vector<1x4x2048xf32>
    %1 = vector.shape_cast %0 : vector<1x4x2048xf32> to vector<4x2048xf32>
    %c0_2 = arith.constant 0 : index
    %c0_3 = arith.constant 0 : index
    %c0_4 = arith.constant 0 : index
    %2 = vector.load %arg3[%c0_2, %c0_3, %c0_4] : memref<1x16x4xf32, #tpu.memory_space<vmem>>, vector<1x16x4xf32>
    %3 = vector.shape_cast %2 : vector<1x16x4xf32> to vector<16x4xf32>
    %cst = arith.constant dense<0.000000e+00> : vector<16x2048xf32>
    %4 = tpu.matmul %3, %1, %cst {dimension_numbers = #tpu.dot_dimension_numbers<[1], [0], [0], [1], [0, 0, 1, 1], [], []>} : vector<16x4xf32>, vector<4x2048xf32>, vector<16x2048xf32> -> vector<16x2048xf32>
    %c0_5 = arith.constant 0 : index
    %c0_6 = arith.constant 0 : index
    %5 = vector.load %arg4[%c0_5, %c0_6] : memref<16x1xf32, #tpu.memory_space<vmem>>, vector<16x1xf32>
    %6 = vector.broadcast %5 : vector<16x1xf32> to vector<16x2048xf32>
    %7 = arith.addf %4, %6 : vector<16x2048xf32>
    %8 = vector.shape_cast %7 : vector<16x2048xf32> to vector<4x2x2x8x16x16xf32>
    %9 = tpu.transpose %8, [0, 3, 4, 1, 5, 2] : vector<4x2x2x8x16x16xf32> -> vector<4x8x16x2x16x2xf32>
    %10 = vector.shape_cast %9 : vector<4x8x16x2x16x2xf32> to vector<4x8x16x64xf32>
    %c0_7 = arith.constant 0 : index
    %c0_8 = arith.constant 0 : index
    %c0_9 = arith.constant 0 : index
    %c0_10 = arith.constant 0 : index
    %c0_11 = arith.constant 0 : index
    %c0_12 = arith.constant 0 : index
    %11 = vector.load %arg6[%c0_7, %c0_8, %c0_9, %c0_10, %c0_11, %c0_12] : memref<1x4x8x1x16x64xf32, #tpu.memory_space<vmem>>, vector<1x4x8x1x16x64xf32>
    %12 = vector.shape_cast %11 : vector<1x4x8x1x16x64xf32> to vector<4x8x16x64xf32>
    %13 = vector.shape_cast %10 : vector<4x8x16x64xf32> to vector<1x4x8x1x16x64xf32>
    tpu.vector_store %arg6[%c0_7, %c0_8, %c0_9, %c0_10, %c0_11, %c0_12], %13 {strides = array<i32>} : memref<1x4x8x1x16x64xf32, #tpu.memory_space<vmem>>, vector<1x4x8x1x16x64xf32>,
    return
  }
  func.func @transform_0(%arg0: i32, %arg1: i32, %arg2: i32) -> (i32, i32, i32) {
    %c0_i32 = arith.constant 0 : i32
    %c0_i32_0 = arith.constant 0 : i32
    %c0_i32_1 = arith.constant 0 : i32
    return %arg2, %c0_i32, %c0_i32_0 : i32, i32, i32
  }
  func.func @transform_1(%arg0: i32, %arg1: i32, %arg2: i32) -> (i32, i32) {
    %c0_i32 = arith.constant 0 : i32
    %c0_i32_0 = arith.constant 0 : i32
    %c0_i32_1 = arith.constant 0 : i32
    return %c0_i32, %c0_i32_0 : i32, i32
  }
  func.func @transform_2(%arg0: i32, %arg1: i32, %arg2: i32) -> (i32, i32, i32) {
    %c0_i32 = arith.constant 0 : i32
    %c0_i32_0 = arith.constant 0 : i32
    return %arg0, %c0_i32, %arg1 : i32, i32, i32
  }
  func.func @transform_3(%arg0: i32, %arg1: i32, %arg2: i32) -> (i32, i32, i32, i32, i32, i32) {
    %c0_i32 = arith.constant 0 : i32
    %c0_i32_0 = arith.constant 0 : i32
    %c0_i32_1 = arith.constant 0 : i32
    %c0_i32_2 = arith.constant 0 : i32
    return %arg0, %c0_i32, %arg1, %arg2, %c0_i32_0, %c0_i32_1 : i32, i32, i32, i32, i32, i32
  }
}

module attributes {stable_mosaic.version = 11 : i64} {
  func.func @_unfused_kernel(%arg0: i32, %arg1: i32, %arg2: memref<32x4xf32, #tpu.memory_space<vmem>>, %arg3: memref<32x1xf32, #tpu.memory_space<vmem>>, %arg4: memref<1x4x1024xf32, #tpu.memory_space<vmem>>, %arg5: memref<1x32x1024xf32, #tpu.memory_space<vmem>>) attributes {dimension_semantics = [#tpu.dimension_semantics<parallel>, #tpu.dimension_semantics<parallel>], iteration_bounds = array<i64: 2, 4>, scalar_prefetch = 0 : i64, scratch_operands = 0 : i64, tpu.core_type = #tpu.core_type<tc>, window_params = [{pipeline_mode = #tpu.pipeline_mode<synchronous>, transform_indices = @transform_0, window_bounds = array<i64: 32, 4>}, {pipeline_mode = #tpu.pipeline_mode<synchronous>, transform_indices = @transform_1, window_bounds = array<i64: 32, 1>}, {transform_indices = @transform_2, window_bounds = array<i64: 1, 4, 1024>}, {transform_indices = @transform_3, window_bounds = array<i64: 1, 32, 1024>}]} {
    %c0 = arith.constant 0 : index
    %c0_0 = arith.constant 0 : index
    %c0_1 = arith.constant 0 : index
    %0 = vector.load %arg4[%c0, %c0_0, %c0_1] : memref<1x4x1024xf32, #tpu.memory_space<vmem>>, vector<1x4x1024xf32>
    %1 = vector.shape_cast %0 : vector<1x4x1024xf32> to vector<4x1024xf32>
    %c0_2 = arith.constant 0 : index
    %c0_3 = arith.constant 0 : index
    %2 = vector.load %arg2[%c0_2, %c0_3] : memref<32x4xf32, #tpu.memory_space<vmem>>, vector<32x4xf32>
    %cst = arith.constant dense<0.000000e+00> : vector<32x1024xf32>
    %3 = tpu.matmul %2, %1, %cst {dimension_numbers = #tpu.dot_dimension_numbers<[1], [0], [0], [1], [0, 0, 1, 1], [], []>} : vector<32x4xf32>, vector<4x1024xf32>, vector<32x1024xf32> -> vector<32x1024xf32>
    %c0_4 = arith.constant 0 : index
    %c0_5 = arith.constant 0 : index
    %4 = vector.load %arg3[%c0_4, %c0_5] : memref<32x1xf32, #tpu.memory_space<vmem>>, vector<32x1xf32>
    %5 = vector.broadcast %4 : vector<32x1xf32> to vector<32x1024xf32>
    %6 = arith.addf %3, %5 : vector<32x1024xf32>
    %c0_6 = arith.constant 0 : index
    %c0_7 = arith.constant 0 : index
    %c0_8 = arith.constant 0 : index
    %7 = vector.load %arg5[%c0_6, %c0_7, %c0_8] : memref<1x32x1024xf32, #tpu.memory_space<vmem>>, vector<1x32x1024xf32>
    %8 = vector.shape_cast %7 : vector<1x32x1024xf32> to vector<32x1024xf32>
    %9 = vector.shape_cast %6 : vector<32x1024xf32> to vector<1x32x1024xf32>
    tpu.vector_store %arg5[%c0_6, %c0_7, %c0_8], %9 {strides = array<i32>} : memref<1x32x1024xf32, #tpu.memory_space<vmem>>, vector<1x32x1024xf32>,
    return
  }
  func.func @transform_0(%arg0: i32, %arg1: i32) -> (i32, i32) {
    %c0_i32 = arith.constant 0 : i32
    %c0_i32_0 = arith.constant 0 : i32
    %c0_i32_1 = arith.constant 0 : i32
    return %c0_i32, %c0_i32_0 : i32, i32
  }
  func.func @transform_1(%arg0: i32, %arg1: i32) -> (i32, i32) {
    %c0_i32 = arith.constant 0 : i32
    %c0_i32_0 = arith.constant 0 : i32
    %c0_i32_1 = arith.constant 0 : i32
    return %c0_i32, %c0_i32_0 : i32, i32
  }
  func.func @transform_2(%arg0: i32, %arg1: i32) -> (i32, i32, i32) {
    %c0_i32 = arith.constant 0 : i32
    %c0_i32_0 = arith.constant 0 : i32
    return %arg0, %c0_i32, %arg1 : i32, i32, i32
  }
  func.func @transform_3(%arg0: i32, %arg1: i32) -> (i32, i32, i32) {
    %c0_i32 = arith.constant 0 : i32
    %c0_i32_0 = arith.constant 0 : i32
    return %arg0, %c0_i32, %arg1 : i32, i32, i32
  }
}

</mosaic_0001>

<llo_original>
// kernel: fwd.1
$region0: #{fwd.1}
  #allocation0 [shape = 'u32[]', space=smem, size = 0x4, offset = 0x4, fixed_abs, tag = 'smem constant byte address 0x4 - core index']
  #allocation1 [shape = 'u32[144,128]{1,0:T(1,128)}', space=vmem, size = 0x12000, scoped, tag = 'internal scratch']
  %s0 = inlined_call_operand.vmem [shape: f32[32,4], index: 0, kind: input, shape index: {}]
  %s1 = inlined_call_operand.vmem [shape: f32[32,1], index: 1, kind: input, shape index: {}]
  %s2 = inlined_call_operand.vmem [shape: f32[2,4,4096], index: 2, kind: input, shape index: {}]
  %s3 = inlined_call_operand.vmem [shape: f32[2,32,4096], index: 3, kind: output, shape index: {}]
  %s4 = sld [smem:[#allocation0]]
  $region64: #{fwd.1} parent=0
    _
  %s6 = ssub.s32 1, %s4
  %s7 = scalar_select 0, %s6, %s4
  $region1: #{fwd.1} parent=0
    #allocation2 [shape = 'u8[262144]{0}', space=vmem, size = 0x40000, scoped, tag = 'output window, operand 0']
    loop: start=0, step=1, limit=10
    $region2: #{fwd.1} parent=1 // loop_pre_header
      _
    $region3: #{fwd.1} parent=1 // loop_header
      %s9 = sphi 0, %s13
      %p10 = scmp.ge.s32.totalorder %s9, 10
      %s16 = sphi 0, %s28
      %s17 = sphi 0, %s24
      %s18 = sphi 0, %s16
      %s19 = sphi 0, %s17
      %s20 = sphi 0, %s18
      %s21 = sphi 0, %s19
      %s29 = sphi 0, %s29
      %s31 = sphi 0, %s29
      %s32 = sphi 0, %s31
      %s46 = sphi 0, %s32
      %s50 = sphi 0, %s50
      %s52 = sphi 0, %s50
      %s53 = sphi 0, %s52
      %s67 = sphi 0, %s53
      %s75 = sphi 0, %s77
      %s78 = sphi 0, %s75
      %s79 = sphi 0, %s78
      %s95 = sphi 0, %s79
      %s103 = sphi 0, %s105
      %s106 = sphi 0, %s103
      %s107 = sphi 0, %s106
      %s123 = sphi 0, %s107
    $region4: #{fwd.1} parent=1 // loop_header_branch
      %12 = sbr.rel (%p10) target = $region8
    $region5: #{fwd.1} parent=1 // loop_body
      %s14 = ssub.s32 %s9, 1
      %s15 = ssub.s32 %s9, 2
      %s22 = sadd.s32 1, %s17
      %p23 = scmp.ge.s32.totalorder %s22, 4
      %s24 = scalar_select %p23, 0, %s22
      %s25 = sadd.s32 1, %s16
      %s26 = scalar_select %p23, %s25, %s16
      %p27 = scmp.ge.s32.totalorder %s26, 2
      %s28 = scalar_select %p27, 0, %s26
      %s30 = sadd.s32 %s29, 1
      %p33 = scmp.eq.s32.totalorder %s9, 7
      %p34 = scmp.ne.s32.totalorder %s29, %s31
      %p35 = scmp.eq.s32.totalorder %s9, 0
      %p36 = por %p34, %p35
      %p37 = scmp.ne.s32.totalorder %s29, %s31
      %p38 = scmp.eq.s32.totalorder %s14, 7
      %p39 = por %p37, %p38
      %p40 = scmp.ne.s32.totalorder %s31, %s32
      %p41 = scmp.eq.s32.totalorder %s14, 0
      %p42 = por %p40, %p41
      %p43 = scmp.ne.s32.totalorder %s31, %s32
      %p44 = scmp.eq.s32.totalorder %s15, 7
      %p45 = por %p43, %p44
      %p47 = scmp.ne.s32.totalorder %s32, %s46
      %p48 = scmp.eq.s32.totalorder %s15, 0
      %p49 = por %p47, %p48
      %s51 = sadd.s32 %s50, 1
      %p54 = scmp.eq.s32.totalorder %s9, 7
      %p55 = scmp.ne.s32.totalorder %s50, %s52
      %p56 = scmp.eq.s32.totalorder %s9, 0
      %p57 = por %p55, %p56
      %p58 = scmp.ne.s32.totalorder %s50, %s52
      %p59 = scmp.eq.s32.totalorder %s14, 7
      %p60 = por %p58, %p59
      %p61 = scmp.ne.s32.totalorder %s52, %s53
      %p62 = scmp.eq.s32.totalorder %s14, 0
      %p63 = por %p61, %p62
      %p64 = scmp.ne.s32.totalorder %s52, %s53
      %p65 = scmp.eq.s32.totalorder %s15, 7
      %p66 = por %p64, %p65
      %p68 = scmp.ne.s32.totalorder %s53, %s67
      %p69 = scmp.eq.s32.totalorder %s15, 0
      %p70 = por %p68, %p69
      %s71 = ssub.s32 %s16, %s28
      %s72 = ssub.s32 %s17, %s24
      %s73 = sor.u32 %s71, %s72
      %p74 = scmp.eq.s32.totalorder %s73, 0
      %s76 = sadd.s32 %s75, 1
      %s77 = scalar_select %p74, %s75, %s76
      %p80 = pneg %p74
      %p81 = scmp.eq.s32.totalorder %s9, 7
      %p82 = por %p80, %p81
      %p83 = scmp.ne.s32.totalorder %s75, %s78
      %p84 = scmp.eq.s32.totalorder %s9, 0
      %p85 = por %p83, %p84
      %p86 = scmp.ne.s32.totalorder %s75, %s78
      %p87 = scmp.eq.s32.totalorder %s14, 7
      %p88 = por %p86, %p87
      %p89 = scmp.ne.s32.totalorder %s78, %s79
      %p90 = scmp.eq.s32.totalorder %s14, 0
      %p91 = por %p89, %p90
      %p92 = scmp.ne.s32.totalorder %s78, %s79
      %p93 = scmp.eq.s32.totalorder %s15, 7
      %p94 = por %p92, %p93
      %p96 = scmp.ne.s32.totalorder %s79, %s95
      %p97 = scmp.eq.s32.totalorder %s15, 0
      %p98 = por %p96, %p97
      %s99 = ssub.s32 %s16, %s28
      %s100 = ssub.s32 %s17, %s24
      %s101 = sor.u32 %s99, %s100
      %p102 = scmp.eq.s32.totalorder %s101, 0
      %s104 = sadd.s32 %s103, 1
      %s105 = scalar_select %p102, %s103, %s104
      %p108 = pneg %p102
      %p109 = scmp.eq.s32.totalorder %s9, 7
      %p110 = por %p108, %p109
      %p111 = scmp.ne.s32.totalorder %s103, %s106
      %p112 = scmp.eq.s32.totalorder %s9, 0
      %p113 = por %p111, %p112
      %p114 = scmp.ne.s32.totalorder %s103, %s106
      %p115 = scmp.eq.s32.totalorder %s14, 7
      %p116 = por %p114, %p115
      %p117 = scmp.ne.s32.totalorder %s106, %s107
      %p118 = scmp.eq.s32.totalorder %s14, 0
      %p119 = por %p117, %p118
      %p120 = scmp.ne.s32.totalorder %s106, %s107
      %p121 = scmp.eq.s32.totalorder %s15, 7
      %p122 = por %p120, %p121
      %p124 = scmp.ne.s32.totalorder %s107, %s123
      %p125 = scmp.eq.s32.totalorder %s15, 0
      %p126 = por %p124, %p125
      %p127 = scmp.le.s32.totalorder 1, %s9
      %p128 = scmp.lt.s32.totalorder %s9, 9
      %p129 = pnand %p127, %p128
      %p130 = pneg %p129
      // Predicated region
      $region9: #{fwd.1} parent=5 // pred_check
        _
      $region10: #{fwd.1} parent=5 // pred_check_branch
        %132 = sbr.rel (%p129) target = $region12
      $region11: #{fwd.1} parent=5 // pred_region
        %s133 = ssub.s32 %s9, 1
        // Predicated region
        $region13: #{fwd.1} parent=11 // pred_check
          %p134 = pneg %p42
        $region14: #{fwd.1} parent=11 // pred_check_branch
          %136 = sbr.rel (%p134) target = $region16
        $region15: #{fwd.1} parent=11 // pred_region
          _
        $region16: #{fwd.1} parent=11 // pred_fallthru
          _
        // Predicated region
        $region17: #{fwd.1} parent=11 // pred_check
          %p137 = pneg %p63
        $region18: #{fwd.1} parent=11 // pred_check_branch
          %139 = sbr.rel (%p137) target = $region20
        $region19: #{fwd.1} parent=11 // pred_region
          _
        $region20: #{fwd.1} parent=11 // pred_fallthru
          _
      $region12: #{fwd.1} parent=5 // pred_fallthru
        _
      %p140 = scmp.lt.s32.totalorder %s9, 8
      // Predicated region
      $region21: #{fwd.1} parent=5 // pred_check
        %p141 = pneg %p140
      $region22: #{fwd.1} parent=5 // pred_check_branch
        %143 = sbr.rel (%p141) target = $region24
      $region23: #{fwd.1} parent=5 // pred_region
        // Predicated region
        $region25: #{fwd.1} parent=23 // pred_check
          %p144 = pneg %p85
        $region26: #{fwd.1} parent=23 // pred_check_branch
          %146 = sbr.rel (%p144) target = $region28
        $region27: #{fwd.1} parent=23 // pred_region
          %s147 = smul.u32 8, %s17
          %p148 = scmp.lt.s32.totalorder %s16, 1
          %s149 = scalar_select %p148, %s16, 1
          %p150 = scmp.lt.s32.totalorder %s147, 31
          %s151 = scalar_select %p150, %s147, 31
          %s152 = smul.addr %s149, 32
          %s153 = sadd.s32 %s151, %s152
          %s154 = smul.addr %s153, 4
          %s155 = scalar_lea.vmem %s2, %s154
          %s156 = smul.u32 8, %s17
        $region28: #{fwd.1} parent=23 // pred_fallthru
          _
      $region24: #{fwd.1} parent=5 // pred_fallthru
        _
      %p157 = scmp.le.s32.totalorder 1, %s9
      %p158 = scmp.lt.s32.totalorder %s9, 9
      %p159 = pnand %p157, %p158
      %p160 = pneg %p159
      // Predicated region
      $region29: #{fwd.1} parent=5 // pred_check
        _
      $region30: #{fwd.1} parent=5 // pred_check_branch
        %162 = sbr.rel (%p159) target = $region32
      $region31: #{fwd.1} parent=5 // pred_region
        %s163 = ssub.s32 %s9, 1
        %p164 = pneg %p42
        %p165 = pneg %p39
        %p166 = pneg %p63
        %p167 = pneg %p60
        %s168 = smul.u32 8, %s19
        %p169 = scmp.lt.s32.totalorder %s18, 1
        %s170 = scalar_select %p169, %s18, 1
        %p171 = scmp.lt.s32.totalorder %s168, 31
        %s172 = scalar_select %p171, %s168, 31
        %s173 = smul.addr %s170, 32
        %s174 = sadd.s32 %s172, %s173
        %s175 = smul.addr %s174, 4
        %s176 = scalar_lea.vmem %s2, %s175
        %p177 = pneg %p91
        %p178 = pneg %p88
        %p179 = pneg %p119
        %p180 = pneg %p116
        %s181 = sand.u32 %s106, 1
        %s182 = sand.u32 %s106, 1
        %s183 = smul.addr %s182, 256
        %s184 = scalar_lea.vmem [#allocation2], %s183
        %s185 = smul.u32 8, %s19
        %p186 = scmp.lt.s32.totalorder %s18, 1
        %s187 = scalar_select %p186, %s18, 1
        %p188 = scmp.lt.s32.totalorder %s185, 31
        %s189 = scalar_select %p188, %s185, 31
        %s190 = smul.addr %s187, 32
        %s191 = sadd.s32 %s189, %s190
        %s192 = smul.addr %s191, 4
        %s193 = scalar_lea.vmem %s2, %s192
        %s194 = smul.u32 8, %s19
        %s195 = smul.u32 8, %s19
        %v196 = vld [vmem:[%s193] sm:$0xff]
        %v197 = vld [vmem:[%s193 + $0x8] sm:$0xff]
        %v198 = vld [vmem:[%s193 + $0x10] sm:$0xff]
        %v199 = vld [vmem:[%s193 + $0x18] sm:$0xff]
        %v200 = vld [vmem:[%s0] sm:$0xff]
        %v201 = vld [vmem:[%s0 + $0x8] sm:$0xff]
        %v202 = vld [vmem:[%s0 + $0x10] sm:$0xff]
        %v203 = vld [vmem:[%s0 + $0x18] sm:$0xff]
        %v204 = vld [vmem:[%s1] sm:$0xff]
        %v205 = vld [vmem:[%s1 + $0x8] sm:$0xff]
        %v206 = vld [vmem:[%s1 + $0x10] sm:$0xff]
        %v207 = vld [vmem:[%s1 + $0x18] sm:$0xff]
        %209 = vset.pattern.permute.xlu0 0
        %210 = vperm.xlu0 %209, %v204
        %v211 = vpop.permute.xlu0 %210
        %214 = vset.pattern.permute.xlu0 0
        %215 = vperm.xlu0 %214, %v205
        %v216 = vpop.permute.xlu0 %215
        %219 = vset.pattern.permute.xlu0 0
        %220 = vperm.xlu0 %219, %v206
        %v221 = vpop.permute.xlu0 %220
        %224 = vset.pattern.permute.xlu0 0
        %225 = vperm.xlu0 %224, %v207
        %v226 = vpop.permute.xlu0 %225
        %v232 = vcombine.high %v196, %v196
        %v233 = vcombine.high %v197, %v197
        %v234 = vcombine.high %v198, %v198
        %v235 = vcombine.high %v199, %v199
        %vm236 = vcmask 31744
        %v238 = vsel %vm236, %v200, 0
        %v241 = vsel %vm236, %v201, 0
        %v244 = vsel %vm236, %v202, 0
        %v247 = vsel %vm236, %v203, 0
        %vm249 = vcmask 1043456
        %v250 = vsel %vm249, %v196, 0
        %v252 = vsel %vm249, %v232, 0
        %v254 = vsel %vm249, %v197, 0
        %v256 = vsel %vm249, %v233, 0
        %v258 = vsel %vm249, %v198, 0
        %v260 = vsel %vm249, %v234, 0
        %v262 = vsel %vm249, %v199, 0
        %v264 = vsel %vm249, %v235, 0
        %266 = vmatprep.subr.mxu0 %v252
        %267 = vmatpush1.msra.mxu0 %v250
        %268 = vmatprep.subr.mxu0 0.0
        %269 = vmatpush1.msra.mxu0 0.0
        %270 = vmatprep.subr.mxu0 0.0
        %271 = vmatpush1.msra.mxu0 0.0
        %272 = vmatprep.subr.mxu0 0.0
        %273 = vmatpush1.msra.mxu0 0.0
        %274 = vmatprep.subr.mxu0 0.0
        %275 = vmatpush1.msra.mxu0 0.0
        %276 = vmatprep.subr.mxu0 0.0
        %277 = vmatpush1.msra.mxu0 0.0
        %278 = vmatprep.subr.mxu0 0.0
        %279 = vmatpush1.msra.mxu0 0.0
        %280 = vmatprep.subr.mxu0 0.0
        %281 = vmatpush1.msra.mxu0 0.0
        %282 = vmatprep.subr.mxu0 0.0
        %283 = vmatpush1.msra.mxu0 0.0
        %284 = vmatprep.subr.mxu0 0.0
        %285 = vmatpush1.msra.mxu0 0.0
        %286 = vmatprep.subr.mxu0 0.0
        %287 = vmatpush1.msra.mxu0 0.0
        %288 = vmatprep.subr.mxu0 0.0
        %289 = vmatpush1.msra.mxu0 0.0
        %290 = vmatprep.subr.mxu0 0.0
        %291 = vmatpush1.msra.mxu0 0.0
        %292 = vmatprep.subr.mxu0 0.0
        %293 = vmatpush1.msra.mxu0 0.0
        %294 = vmatprep.subr.mxu0 0.0
        %295 = vmatpush1.msra.mxu0 0.0
        %296 = vmatprep.subr.mxu0 0.0
        %297 = vmatpush1.msra.mxu0 0.0
        %298 = vmatprep.subr.mxu0 0.0
        %299 = vmatpush1.msra.mxu0 0.0
        %300 = vmatprep.subr.mxu0 0.0
        %301 = vmatpush1.msra.mxu0 0.0
        %302 = vmatprep.subr.mxu0 0.0
        %303 = vmatpush1.msra.mxu0 0.0
        %304 = vmatprep.subr.mxu0 0.0
        %305 = vmatpush1.msra.mxu0 0.0
        %306 = vmatprep.subr.mxu0 0.0
        %307 = vmatpush1.msra.mxu0 0.0
        %308 = vmatprep.subr.mxu0 0.0
        %309 = vmatpush1.msra.mxu0 0.0
        %310 = vmatprep.subr.mxu0 0.0
        %311 = vmatpush1.msra.mxu0 0.0
        %312 = vmatprep.subr.mxu0 0.0
        %313 = vmatpush1.msra.mxu0 0.0
        %314 = vmatprep.subr.mxu0 0.0
        %315 = vmatpush1.msra.mxu0 0.0
        %316 = vmatprep.subr.mxu0 0.0
        %317 = vmatpush1.msra.mxu0 0.0
        %318 = vmatprep.subr.mxu0 0.0
        %319 = vmatpush1.msra.mxu0 0.0
        %320 = vmatprep.subr.mxu0 0.0
        %321 = vmatpush1.msra.mxu0 0.0
        %322 = vmatprep.subr.mxu0 0.0
        %323 = vmatpush1.msra.mxu0 0.0
        %324 = vmatprep.subr.mxu0 0.0
        %325 = vmatpush1.msra.mxu0 0.0
        %326 = vmatprep.subr.mxu0 0.0
        %327 = vmatpush1.msra.mxu0 0.0
        %328 = vmatprep.subr.mxu0 0.0
        %329 = vmatpush1.msra.mxu0 0.0
        %330 = vmatprep.mubr.f32.mxu0 0.0
        %331 = vmatmul.mubr.f32.gmra.mrb[0].mxu0 %v238
        %v332 = vpop.f32.mrb[0].mxu0
        %v333 = vadd.f32 %v211, %v332
        %v334 = vpop.f32.mrb[0].mxu0
        %v335 = vadd.f32 %v211, %v334
        %336 = vmatprep.mubr.f32.mxu0 0.0
        %337 = vmatmul.mubr.f32.gmra.mrb[0].mxu0 %v241
        %v338 = vpop.f32.mrb[0].mxu0
        %v339 = vadd.f32 %v216, %v338
        %v340 = vpop.f32.mrb[0].mxu0
        %v341 = vadd.f32 %v216, %v340
        %342 = vmatprep.mubr.f32.mxu0 0.0
        %343 = vmatmul.mubr.f32.gmra.mrb[0].mxu0 %v244
        %v344 = vpop.f32.mrb[0].mxu0
        %v345 = vadd.f32 %v221, %v344
        %v346 = vpop.f32.mrb[0].mxu0
        %v347 = vadd.f32 %v221, %v346
        %348 = vmatprep.mubr.f32.mxu0 0.0
        %349 = vmatmul.mubr.f32.gmra.mrb[0].mxu0 %v247
        %v350 = vpop.f32.mrb[0].mxu0
        %v351 = vadd.f32 %v226, %v350
        %v352 = vpop.f32.mrb[0].mxu0
        %v353 = vadd.f32 %v226, %v352
        %354 = vdwg.mxu0
        %355 = vmatprep.subr.mxu0 %v256
        %356 = vmatpush1.msra.mxu0 %v254
        %357 = vmatprep.subr.mxu0 0.0
        %358 = vmatpush1.msra.mxu0 0.0
        %359 = vmatprep.subr.mxu0 0.0
        %360 = vmatpush1.msra.mxu0 0.0
        %361 = vmatprep.subr.mxu0 0.0
        %362 = vmatpush1.msra.mxu0 0.0
        %363 = vmatprep.subr.mxu0 0.0
        %364 = vmatpush1.msra.mxu0 0.0
        %365 = vmatprep.subr.mxu0 0.0
        %366 = vmatpush1.msra.mxu0 0.0
        %367 = vmatprep.subr.mxu0 0.0
        %368 = vmatpush1.msra.mxu0 0.0
        %369 = vmatprep.subr.mxu0 0.0
        %370 = vmatpush1.msra.mxu0 0.0
        %371 = vmatprep.subr.mxu0 0.0
        %372 = vmatpush1.msra.mxu0 0.0
        %373 = vmatprep.subr.mxu0 0.0
        %374 = vmatpush1.msra.mxu0 0.0
        %375 = vmatprep.subr.mxu0 0.0
        %376 = vmatpush1.msra.mxu0 0.0
        %377 = vmatprep.subr.mxu0 0.0
        %378 = vmatpush1.msra.mxu0 0.0
        %379 = vmatprep.subr.mxu0 0.0
        %380 = vmatpush1.msra.mxu0 0.0
        %381 = vmatprep.subr.mxu0 0.0
        %382 = vmatpush1.msra.mxu0 0.0
        %383 = vmatprep.subr.mxu0 0.0
        %384 = vmatpush1.msra.mxu0 0.0
        %385 = vmatprep.subr.mxu0 0.0
        %386 = vmatpush1.msra.mxu0 0.0
        %387 = vmatprep.subr.mxu0 0.0
        %388 = vmatpush1.msra.mxu0 0.0
        %389 = vmatprep.subr.mxu0 0.0
        %390 = vmatpush1.msra.mxu0 0.0
        %391 = vmatprep.subr.mxu0 0.0
        %392 = vmatpush1.msra.mxu0 0.0
        %393 = vmatprep.subr.mxu0 0.0
        %394 = vmatpush1.msra.mxu0 0.0
        %395 = vmatprep.subr.mxu0 0.0
        %396 = vmatpush1.msra.mxu0 0.0
        %397 = vmatprep.subr.mxu0 0.0
        %398 = vmatpush1.msra.mxu0 0.0
        %399 = vmatprep.subr.mxu0 0.0
        %400 = vmatpush1.msra.mxu0 0.0
        %401 = vmatprep.subr.mxu0 0.0
        %402 = vmatpush1.msra.mxu0 0.0
        %403 = vmatprep.subr.mxu0 0.0
        %404 = vmatpush1.msra.mxu0 0.0
        %405 = vmatprep.subr.mxu0 0.0
        %406 = vmatpush1.msra.mxu0 0.0
        %407 = vmatprep.subr.mxu0 0.0
        %408 = vmatpush1.msra.mxu0 0.0
        %409 = vmatprep.subr.mxu0 0.0
        %410 = vmatpush1.msra.mxu0 0.0
        %411 = vmatprep.subr.mxu0 0.0
        %412 = vmatpush1.msra.mxu0 0.0
        %413 = vmatprep.subr.mxu0 0.0
        %414 = vmatpush1.msra.mxu0 0.0
        %415 = vmatprep.subr.mxu0 0.0
        %416 = vmatpush1.msra.mxu0 0.0
        %417 = vmatprep.subr.mxu0 0.0
        %418 = vmatpush1.msra.mxu0 0.0
        %419 = vmatprep.mubr.f32.mxu0 0.0
        %420 = vmatmul.mubr.f32.gmra.mrb[0].mxu0 %v238
        %v421 = vpop.f32.mrb[0].mxu0
        %v422 = vadd.f32 %v211, %v421
        %v423 = vpop.f32.mrb[0].mxu0
        %v424 = vadd.f32 %v211, %v423
        %425 = vmatprep.mubr.f32.mxu0 0.0
        %426 = vmatmul.mubr.f32.gmra.mrb[0].mxu0 %v241
        %v427 = vpop.f32.mrb[0].mxu0
        %v428 = vadd.f32 %v216, %v427
        %v429 = vpop.f32.mrb[0].mxu0
        %v430 = vadd.f32 %v216, %v429
        %431 = vmatprep.mubr.f32.mxu0 0.0
        %432 = vmatmul.mubr.f32.gmra.mrb[0].mxu0 %v244
        %v433 = vpop.f32.mrb[0].mxu0
        %v434 = vadd.f32 %v221, %v433
        %v435 = vpop.f32.mrb[0].mxu0
        %v436 = vadd.f32 %v221, %v435
        %437 = vmatprep.mubr.f32.mxu0 0.0
        %438 = vmatmul.mubr.f32.gmra.mrb[0].mxu0 %v247
        %v439 = vpop.f32.mrb[0].mxu0
        %v440 = vadd.f32 %v226, %v439
        %v441 = vpop.f32.mrb[0].mxu0
        %v442 = vadd.f32 %v226, %v441
        %443 = vdwg.mxu0
        %444 = vmatprep.subr.mxu0 %v260
        %445 = vmatpush1.msra.mxu0 %v258
        %446 = vmatprep.subr.mxu0 0.0
        %447 = vmatpush1.msra.mxu0 0.0
        %448 = vmatprep.subr.mxu0 0.0
        %449 = vmatpush1.msra.mxu0 0.0
        %450 = vmatprep.subr.mxu0 0.0
        %451 = vmatpush1.msra.mxu0 0.0
        %452 = vmatprep.subr.mxu0 0.0
        %453 = vmatpush1.msra.mxu0 0.0
        %454 = vmatprep.subr.mxu0 0.0
        %455 = vmatpush1.msra.mxu0 0.0
        %456 = vmatprep.subr.mxu0 0.0
        %457 = vmatpush1.msra.mxu0 0.0
        %458 = vmatprep.subr.mxu0 0.0
        %459 = vmatpush1.msra.mxu0 0.0
        %460 = vmatprep.subr.mxu0 0.0
        %461 = vmatpush1.msra.mxu0 0.0
        %462 = vmatprep.subr.mxu0 0.0
        %463 = vmatpush1.msra.mxu0 0.0
        %464 = vmatprep.subr.mxu0 0.0
        %465 = vmatpush1.msra.mxu0 0.0
        %466 = vmatprep.subr.mxu0 0.0
        %467 = vmatpush1.msra.mxu0 0.0
        %468 = vmatprep.subr.mxu0 0.0
        %469 = vmatpush1.msra.mxu0 0.0
        %470 = vmatprep.subr.mxu0 0.0
        %471 = vmatpush1.msra.mxu0 0.0
        %472 = vmatprep.subr.mxu0 0.0
        %473 = vmatpush1.msra.mxu0 0.0
        %474 = vmatprep.subr.mxu0 0.0
        %475 = vmatpush1.msra.mxu0 0.0
        %476 = vmatprep.subr.mxu0 0.0
        %477 = vmatpush1.msra.mxu0 0.0
        %478 = vmatprep.subr.mxu0 0.0
        %479 = vmatpush1.msra.mxu0 0.0
        %480 = vmatprep.subr.mxu0 0.0
        %481 = vmatpush1.msra.mxu0 0.0
        %482 = vmatprep.subr.mxu0 0.0
        %483 = vmatpush1.msra.mxu0 0.0
        %484 = vmatprep.subr.mxu0 0.0
        %485 = vmatpush1.msra.mxu0 0.0
        %486 = vmatprep.subr.mxu0 0.0
        %487 = vmatpush1.msra.mxu0 0.0
        %488 = vmatprep.subr.mxu0 0.0
        %489 = vmatpush1.msra.mxu0 0.0
        %490 = vmatprep.subr.mxu0 0.0
        %491 = vmatpush1.msra.mxu0 0.0
        %492 = vmatprep.subr.mxu0 0.0
        %493 = vmatpush1.msra.mxu0 0.0
        %494 = vmatprep.subr.mxu0 0.0
        %495 = vmatpush1.msra.mxu0 0.0
        %496 = vmatprep.subr.mxu0 0.0
        %497 = vmatpush1.msra.mxu0 0.0
        %498 = vmatprep.subr.mxu0 0.0
        %499 = vmatpush1.msra.mxu0 0.0
        %500 = vmatprep.subr.mxu0 0.0
        %501 = vmatpush1.msra.mxu0 0.0
        %502 = vmatprep.subr.mxu0 0.0
        %503 = vmatpush1.msra.mxu0 0.0
        %504 = vmatprep.subr.mxu0 0.0
        %505 = vmatpush1.msra.mxu0 0.0
        %506 = vmatprep.subr.mxu0 0.0
        %507 = vmatpush1.msra.mxu0 0.0
        %508 = vmatprep.mubr.f32.mxu0 0.0
        %509 = vmatmul.mubr.f32.gmra.mrb[0].mxu0 %v238
        %v510 = vpop.f32.mrb[0].mxu0
        %v511 = vadd.f32 %v211, %v510
        %v512 = vpop.f32.mrb[0].mxu0
        %v513 = vadd.f32 %v211, %v512
        %514 = vmatprep.mubr.f32.mxu0 0.0
        %515 = vmatmul.mubr.f32.gmra.mrb[0].mxu0 %v241
        %v516 = vpop.f32.mrb[0].mxu0
        %v517 = vadd.f32 %v216, %v516
        %v518 = vpop.f32.mrb[0].mxu0
        %v519 = vadd.f32 %v216, %v518
        %520 = vmatprep.mubr.f32.mxu0 0.0
        %521 = vmatmul.mubr.f32.gmra.mrb[0].mxu0 %v244
        %v522 = vpop.f32.mrb[0].mxu0
        %v523 = vadd.f32 %v221, %v522
        %v524 = vpop.f32.mrb[0].mxu0
        %v525 = vadd.f32 %v221, %v524
        %526 = vmatprep.mubr.f32.mxu0 0.0
        %527 = vmatmul.mubr.f32.gmra.mrb[0].mxu0 %v247
        %v528 = vpop.f32.mrb[0].mxu0
        %v529 = vadd.f32 %v226, %v528
        %v530 = vpop.f32.mrb[0].mxu0
        %v531 = vadd.f32 %v226, %v530
        %532 = vdwg.mxu0
        %533 = vmatprep.subr.mxu0 %v264
        %534 = vmatpush1.msra.mxu0 %v262
        %535 = vmatprep.subr.mxu0 0.0
        %536 = vmatpush1.msra.mxu0 0.0
        %537 = vmatprep.subr.mxu0 0.0
        %538 = vmatpush1.msra.mxu0 0.0
        %539 = vmatprep.subr.mxu0 0.0
        %540 = vmatpush1.msra.mxu0 0.0
        %541 = vmatprep.subr.mxu0 0.0
        %542 = vmatpush1.msra.mxu0 0.0
        %543 = vmatprep.subr.mxu0 0.0
        %544 = vmatpush1.msra.mxu0 0.0
        %545 = vmatprep.subr.mxu0 0.0
        %546 = vmatpush1.msra.mxu0 0.0
        %547 = vmatprep.subr.mxu0 0.0
        %548 = vmatpush1.msra.mxu0 0.0
        %549 = vmatprep.subr.mxu0 0.0
        %550 = vmatpush1.msra.mxu0 0.0
        %551 = vmatprep.subr.mxu0 0.0
        %552 = vmatpush1.msra.mxu0 0.0
        %553 = vmatprep.subr.mxu0 0.0
        %554 = vmatpush1.msra.mxu0 0.0
        %555 = vmatprep.subr.mxu0 0.0
        %556 = vmatpush1.msra.mxu0 0.0
        %557 = vmatprep.subr.mxu0 0.0
        %558 = vmatpush1.msra.mxu0 0.0
        %559 = vmatprep.subr.mxu0 0.0
        %560 = vmatpush1.msra.mxu0 0.0
        %561 = vmatprep.subr.mxu0 0.0
        %562 = vmatpush1.msra.mxu0 0.0
        %563 = vmatprep.subr.mxu0 0.0
        %564 = vmatpush1.msra.mxu0 0.0
        %565 = vmatprep.subr.mxu0 0.0
        %566 = vmatpush1.msra.mxu0 0.0
        %567 = vmatprep.subr.mxu0 0.0
        %568 = vmatpush1.msra.mxu0 0.0
        %569 = vmatprep.subr.mxu0 0.0
        %570 = vmatpush1.msra.mxu0 0.0
        %571 = vmatprep.subr.mxu0 0.0
        %572 = vmatpush1.msra.mxu0 0.0
        %573 = vmatprep.subr.mxu0 0.0
        %574 = vmatpush1.msra.mxu0 0.0
        %575 = vmatprep.subr.mxu0 0.0
        %576 = vmatpush1.msra.mxu0 0.0
        %577 = vmatprep.subr.mxu0 0.0
        %578 = vmatpush1.msra.mxu0 0.0
        %579 = vmatprep.subr.mxu0 0.0
        %580 = vmatpush1.msra.mxu0 0.0
        %581 = vmatprep.subr.mxu0 0.0
        %582 = vmatpush1.msra.mxu0 0.0
        %583 = vmatprep.subr.mxu0 0.0
        %584 = vmatpush1.msra.mxu0 0.0
        %585 = vmatprep.subr.mxu0 0.0
        %586 = vmatpush1.msra.mxu0 0.0
        %587 = vmatprep.subr.mxu0 0.0
        %588 = vmatpush1.msra.mxu0 0.0
        %589 = vmatprep.subr.mxu0 0.0
        %590 = vmatpush1.msra.mxu0 0.0
        %591 = vmatprep.subr.mxu0 0.0
        %592 = vmatpush1.msra.mxu0 0.0
        %593 = vmatprep.subr.mxu0 0.0
        %594 = vmatpush1.msra.mxu0 0.0
        %595 = vmatprep.subr.mxu0 0.0
        %596 = vmatpush1.msra.mxu0 0.0
        %597 = vmatprep.mubr.f32.mxu0 0.0
        %598 = vmatmul.mubr.f32.gmra.mrb[0].mxu0 %v238
        %v599 = vpop.f32.mrb[0].mxu0
        %v600 = vadd.f32 %v211, %v599
        %v601 = vpop.f32.mrb[0].mxu0
        %v602 = vadd.f32 %v211, %v601
        %603 = vmatprep.mubr.f32.mxu0 0.0
        %604 = vmatmul.mubr.f32.gmra.mrb[0].mxu0 %v241
        %v605 = vpop.f32.mrb[0].mxu0
        %v606 = vadd.f32 %v216, %v605
        %v607 = vpop.f32.mrb[0].mxu0
        %v608 = vadd.f32 %v216, %v607
        %609 = vmatprep.mubr.f32.mxu0 0.0
        %610 = vmatmul.mubr.f32.gmra.mrb[0].mxu0 %v244
        %v611 = vpop.f32.mrb[0].mxu0
        %v612 = vadd.f32 %v221, %v611
        %v613 = vpop.f32.mrb[0].mxu0
        %v614 = vadd.f32 %v221, %v613
        %615 = vmatprep.mubr.f32.mxu0 0.0
        %616 = vmatmul.mubr.f32.gmra.mrb[0].mxu0 %v247
        %v617 = vpop.f32.mrb[0].mxu0
        %v618 = vadd.f32 %v226, %v617
        %v619 = vpop.f32.mrb[0].mxu0
        %v620 = vadd.f32 %v226, %v619
        %621 = vdwg.mxu0
        %622 = vst [vmem:[%s184] sm:$0xff] %v333
        %623 = vst [vmem:[%s184 + $0x8] sm:$0xff] %v335
        %624 = vst [vmem:[%s184 + $0x10] sm:$0xff] %v422
        %625 = vst [vmem:[%s184 + $0x18] sm:$0xff] %v424
        %626 = vst [vmem:[%s184 + $0x20] sm:$0xff] %v511
        %627 = vst [vmem:[%s184 + $0x28] sm:$0xff] %v513
        %628 = vst [vmem:[%s184 + $0x30] sm:$0xff] %v600
        %629 = vst [vmem:[%s184 + $0x38] sm:$0xff] %v602
        %630 = vst [vmem:[%s184 + $0x40] sm:$0xff] %v339
        %631 = vst [vmem:[%s184 + $0x48] sm:$0xff] %v341
        %632 = vst [vmem:[%s184 + $0x50] sm:$0xff] %v428
        %633 = vst [vmem:[%s184 + $0x58] sm:$0xff] %v430
        %634 = vst [vmem:[%s184 + $0x60] sm:$0xff] %v517
        %635 = vst [vmem:[%s184 + $0x68] sm:$0xff] %v519
        %636 = vst [vmem:[%s184 + $0x70] sm:$0xff] %v606
        %637 = vst [vmem:[%s184 + $0x78] sm:$0xff] %v608
        %638 = vst [vmem:[%s184 + $0x80] sm:$0xff] %v345
        %639 = vst [vmem:[%s184 + $0x88] sm:$0xff] %v347
        %640 = vst [vmem:[%s184 + $0x90] sm:$0xff] %v434
        %641 = vst [vmem:[%s184 + $0x98] sm:$0xff] %v436
        %642 = vst [vmem:[%s184 + $0xa0] sm:$0xff] %v523
        %643 = vst [vmem:[%s184 + $0xa8] sm:$0xff] %v525
        %644 = vst [vmem:[%s184 + $0xb0] sm:$0xff] %v612
        %645 = vst [vmem:[%s184 + $0xb8] sm:$0xff] %v614
        %646 = vst [vmem:[%s184 + $0xc0] sm:$0xff] %v351
        %647 = vst [vmem:[%s184 + $0xc8] sm:$0xff] %v353
        %648 = vst [vmem:[%s184 + $0xd0] sm:$0xff] %v440
        %649 = vst [vmem:[%s184 + $0xd8] sm:$0xff] %v442
        %650 = vst [vmem:[%s184 + $0xe0] sm:$0xff] %v529
        %651 = vst [vmem:[%s184 + $0xe8] sm:$0xff] %v531
        %652 = vst [vmem:[%s184 + $0xf0] sm:$0xff] %v618
        %653 = vst [vmem:[%s184 + $0xf8] sm:$0xff] %v620
        %s654 = sand.u32 %s106, 1
        %s655 = sand.u32 %s106, 1
        %s656 = smul.addr %s655, 256
        %s657 = scalar_lea.vmem [#allocation2], %s656
        // Predicated region
        $region33: #{fwd.1} parent=31 // pred_check
          %p658 = pneg %p116
        $region34: #{fwd.1} parent=31 // pred_check_branch
          %660 = sbr.rel (%p658) target = $region36
        $region35: #{fwd.1} parent=31 // pred_region
          %s661 = smul.u32 8, %s19
          %s662 = smul.addr %s18, 128
          %s663 = sadd.s32 %s661, %s662
          %s664 = smul.addr %s663, 8
          %s665 = scalar_lea.vmem %s3, %s664
          // Predicated region
          $region37: #{fwd.1} parent=35 // pred_check
            _
          $region38: #{fwd.1} parent=35 // pred_check_branch
            %667 = sbr.rel (0) target = $region40
          $region39: #{fwd.1} parent=35 // pred_region
            // Predicated region
            $region41: #{fwd.1} parent=39 // pred_check
              _
            $region42: #{fwd.1} parent=39 // pred_check_branch
              %669 = sbr.rel (0) target = $region44
            $region43: #{fwd.1} parent=39 // pred_region
              loop: start=0, step=1, limit=1
              $region45: #{fwd.1} parent=43 // loop_pre_header
                _
              $region46: #{fwd.1} parent=43 // loop_header
                %s671 = sphi 0, %s675
                %p672 = scmp.ge.s32.totalorder %s671, 1
                %s676 = sphi %s657, %s657
                %s677 = sphi %s665, %s665
              $region47: #{fwd.1} parent=43 // loop_header_branch
                %674 = sbr.rel (%p672) target = $region51
              $region48: #{fwd.1} parent=43 // loop_body
                %v678 = vld [vmem:[%s676] sm:$0xff]
                %679 = vst [vmem:[%s677] sm:$0xff] %v678
                %v680 = vld [vmem:[%s676 + $0x8] sm:$0xff]
                %681 = vst [vmem:[%s677 + $0x8] sm:$0xff] %v680
                %v682 = vld [vmem:[%s676 + $0x10] sm:$0xff]
                %683 = vst [vmem:[%s677 + $0x10] sm:$0xff] %v682
                %v684 = vld [vmem:[%s676 + $0x18] sm:$0xff]
                %685 = vst [vmem:[%s677 + $0x18] sm:$0xff] %v684
                %v686 = vld [vmem:[%s676 + $0x20] sm:$0xff]
                %687 = vst [vmem:[%s677 + $0x20] sm:$0xff] %v686
                %v688 = vld [vmem:[%s676 + $0x28] sm:$0xff]
                %689 = vst [vmem:[%s677 + $0x28] sm:$0xff] %v688
                %v690 = vld [vmem:[%s676 + $0x30] sm:$0xff]
                %691 = vst [vmem:[%s677 + $0x30] sm:$0xff] %v690
                %v692 = vld [vmem:[%s676 + $0x38] sm:$0xff]
                %693 = vst [vmem:[%s677 + $0x38] sm:$0xff] %v692
                %v694 = vld [vmem:[%s676 + $0x40] sm:$0xff]
                %695 = vst [vmem:[%s677 + $0x100] sm:$0xff] %v694
                %v696 = vld [vmem:[%s676 + $0x48] sm:$0xff]
                %697 = vst [vmem:[%s677 + $0x108] sm:$0xff] %v696
                %v698 = vld [vmem:[%s676 + $0x50] sm:$0xff]
                %699 = vst [vmem:[%s677 + $0x110] sm:$0xff] %v698
                %v700 = vld [vmem:[%s676 + $0x58] sm:$0xff]
                %701 = vst [vmem:[%s677 + $0x118] sm:$0xff] %v700
                %v702 = vld [vmem:[%s676 + $0x60] sm:$0xff]
                %703 = vst [vmem:[%s677 + $0x120] sm:$0xff] %v702
                %v704 = vld [vmem:[%s676 + $0x68] sm:$0xff]
                %705 = vst [vmem:[%s677 + $0x128] sm:$0xff] %v704
                %v706 = vld [vmem:[%s676 + $0x70] sm:$0xff]
                %707 = vst [vmem:[%s677 + $0x130] sm:$0xff] %v706
                %v708 = vld [vmem:[%s676 + $0x78] sm:$0xff]
                %709 = vst [vmem:[%s677 + $0x138] sm:$0xff] %v708
                %v710 = vld [vmem:[%s676 + $0x80] sm:$0xff]
                %711 = vst [vmem:[%s677 + $0x200] sm:$0xff] %v710
                %v712 = vld [vmem:[%s676 + $0x88] sm:$0xff]
                %713 = vst [vmem:[%s677 + $0x208] sm:$0xff] %v712
                %v714 = vld [vmem:[%s676 + $0x90] sm:$0xff]
                %715 = vst [vmem:[%s677 + $0x210] sm:$0xff] %v714
                %v716 = vld [vmem:[%s676 + $0x98] sm:$0xff]
                %717 = vst [vmem:[%s677 + $0x218] sm:$0xff] %v716
                %v718 = vld [vmem:[%s676 + $0xa0] sm:$0xff]
                %719 = vst [vmem:[%s677 + $0x220] sm:$0xff] %v718
                %v720 = vld [vmem:[%s676 + $0xa8] sm:$0xff]
                %721 = vst [vmem:[%s677 + $0x228] sm:$0xff] %v720
                %v722 = vld [vmem:[%s676 + $0xb0] sm:$0xff]
                %723 = vst [vmem:[%s677 + $0x230] sm:$0xff] %v722
                %v724 = vld [vmem:[%s676 + $0xb8] sm:$0xff]
                %725 = vst [vmem:[%s677 + $0x238] sm:$0xff] %v724
                %v726 = vld [vmem:[%s676 + $0xc0] sm:$0xff]
                %727 = vst [vmem:[%s677 + $0x300] sm:$0xff] %v726
                %v728 = vld [vmem:[%s676 + $0xc8] sm:$0xff]
                %729 = vst [vmem:[%s677 + $0x308] sm:$0xff] %v728
                %v730 = vld [vmem:[%s676 + $0xd0] sm:$0xff]
                %731 = vst [vmem:[%s677 + $0x310] sm:$0xff] %v730
                %v732 = vld [vmem:[%s676 + $0xd8] sm:$0xff]
                %733 = vst [vmem:[%s677 + $0x318] sm:$0xff] %v732
                %v734 = vld [vmem:[%s676 + $0xe0] sm:$0xff]
                %735 = vst [vmem:[%s677 + $0x320] sm:$0xff] %v734
                %v736 = vld [vmem:[%s676 + $0xe8] sm:$0xff]
                %737 = vst [vmem:[%s677 + $0x328] sm:$0xff] %v736
                %v738 = vld [vmem:[%s676 + $0xf0] sm:$0xff]
                %739 = vst [vmem:[%s677 + $0x330] sm:$0xff] %v738
                %v740 = vld [vmem:[%s676 + $0xf8] sm:$0xff]
                %741 = vst [vmem:[%s677 + $0x338] sm:$0xff] %v740
              $region49: #{fwd.1} parent=43 // loop_footer
                %s675 = sadd.s32 1, %s671
              $region50: #{fwd.1} parent=43 // loop_footer_branch
                %670 = sbr.rel target = $region46
              $region51: #{fwd.1} parent=43 // loop_exit
                _
            $region44: #{fwd.1} parent=39 // pred_fallthru
              _
            // Predicated region
            $region52: #{fwd.1} parent=39 // pred_check
              _
            $region53: #{fwd.1} parent=39 // pred_check_branch
              %743 = sbr.rel target = $region55
            $region54: #{fwd.1} parent=39 // pred_region
              _
            $region55: #{fwd.1} parent=39 // pred_fallthru
              _
          $region40: #{fwd.1} parent=35 // pred_fallthru
            _
          %744 = vnop
        $region36: #{fwd.1} parent=31 // pred_fallthru
          _
      $region32: #{fwd.1} parent=5 // pred_fallthru
        _
      %p745 = scmp.le.s32.totalorder 2, %s9
      // Predicated region
      $region56: #{fwd.1} parent=5 // pred_check
        %p746 = pneg %p745
      $region57: #{fwd.1} parent=5 // pred_check_branch
        %748 = sbr.rel (%p746) target = $region59
      $region58: #{fwd.1} parent=5 // pred_region
        %s749 = ssub.s32 %s9, 2
        // Predicated region
        $region60: #{fwd.1} parent=58 // pred_check
          %p750 = pneg %p122
        $region61: #{fwd.1} parent=58 // pred_check_branch
          %752 = sbr.rel (%p750) target = $region63
        $region62: #{fwd.1} parent=58 // pred_region
          %s753 = sand.u32 %s107, 1
          %s754 = sand.u32 %s107, 1
          %s755 = smul.addr %s754, 256
          %s756 = scalar_lea.vmem [#allocation2], %s755
        $region63: #{fwd.1} parent=58 // pred_fallthru
          _
      $region59: #{fwd.1} parent=5 // pred_fallthru
        _
    $region6: #{fwd.1} parent=1 // loop_footer
      %s13 = sadd.s32 1, %s9
    $region7: #{fwd.1} parent=1 // loop_footer_branch
      %8 = sbr.rel target = $region3
    $region8: #{fwd.1} parent=1 // loop_exit
      _

</llo_original>
